<compile_context>
chip_gen: v5e
topology: v5e:2x2
jax: 0.10.0
libtpu: 0.0.40
codegen_flags: <defaults>
</compile_context>

<pallas_src>
import math
import functools

import jax
import jax.numpy as jnp
from jax import lax
from jax.experimental import pallas as pl
from jax.experimental.pallas import tpu as pltpu


def _pos_enc_kernel(seed_ref, x_ref, pe_ref, o_ref, *, p, training, batch):
    x = x_ref[...]                                   # (TS, B*D)
    pe = pe_ref[...]                                 # (TS, D), already x.dtype
    # Replicate pe along the lane axis: flat column b*D + d  ->  pe[row, d].
    pe_b = jnp.concatenate([pe] * batch, axis=-1) if batch > 1 else pe
    y = x + pe_b

    if training and p > 0.0:
        if p >= 1.0:
            y = jnp.zeros_like(y)
        else:
            # TODO(synk): RNG stream differs from torch.nn.Dropout (semantics
            # match: keep-prob = 1-p, kept values scaled by 1/(1-p)).
            ts, bd = y.shape
            # Counter-based hash on the *global* element index so every grid
            # tile gets an independent, reproducible mask.
            row = lax.broadcasted_iota(jnp.uint32, (ts, bd), 0)
            col = lax.broadcasted_iota(jnp.uint32, (ts, bd), 1)
            row0 = (pl.program_id(0) * ts).astype(jnp.uint32)
            idx = (row0 + row) * jnp.uint32(bd) + col
            seed = seed_ref[0].astype(jnp.uint32)
            h = idx * jnp.uint32(0x9E3779B1) + seed * jnp.uint32(0x85EBCA77)
            h = (h ^ (h >> 16)) * jnp.uint32(0x7FEB352D)   # splitmix32 finalizer
            h = (h ^ (h >> 15)) * jnp.uint32(0x846CA68B)
            h = h ^ (h >> 16)
            # Integer threshold test on 23 bits: no uint->f32 convert, no 2^-23
            # multiply; single precomputed 1/(1-p) scale on the kept path.
            bits = (h & jnp.uint32(0x7FFFFF)).astype(jnp.int32)
            threshold = jnp.int32(int(round(p * float(1 << 23))))
            keep = bits >= threshold
            scale = jnp.asarray(1.0 / (1.0 - p), dtype=y.dtype)
            y = jnp.where(keep, y * scale, jnp.zeros_like(y))

    o_ref[...] = y.astype(o_ref.dtype)


def make_positional_encoding_table(d_model: int, max_len: int = 5000,
                                   dtype=jnp.float32):
    """Deterministic buffer setup (matches the torch __init__)."""
    position = jnp.arange(max_len, dtype=jnp.float32)[:, None]            # (L, 1)
    div_term = jnp.exp(jnp.arange(0, d_model, 2, dtype=jnp.float32)
                       * (-math.log(10000.0) / d_model))                  # (D/2,)
    ang = position * div_term                                             # (L, D/2)
    pe = jnp.zeros((max_len, d_model), dtype=jnp.float32)
    pe = pe.at[:, 0::2].set(jnp.sin(ang))
    pe = pe.at[:, 1::2].set(jnp.cos(ang))
    return pe.astype(dtype)


def _choose_tile_rows(S, row_bytes, target_bytes=2 * 1024 * 1024):
    """Biggest seq-tile with ~target_bytes per block (multiple of 8, <= S)."""
    ts = max(1, target_bytes // max(1, row_bytes))
    if ts >= S:
        return S
    return max(8, (ts // 8) * 8)


def positional_encoding(x, pe_table, *, p: float = 0.1, training: bool = False,
                        seed: int = 0, tile_rows=None):
    """x: [seq_len, batch, d_model]; pe_table: [max_len, d_model]."""
    S, B, D = x.shape
    pe = pe_table[:S].astype(x.dtype)        # host-side slice + cast (once)
    x2 = x.reshape(S, B * D)                 # free view: merge trailing dims

    if tile_rows is None:
        ts = _choose_tile_rows(S, B * D * x.dtype.itemsize)
    else:
        ts = int(tile_rows)
    grid = (pl.cdiv(S, ts),)

    seed_arr = jnp.array([seed], dtype=jnp.int32)
    kernel = functools.partial(_pos_enc_kernel, p=float(p),
                               training=bool(training), batch=B)

    out2 = pl.pallas_call(
        kernel,
        out_shape=jax.ShapeDtypeStruct((S, B * D), x.dtype),
        grid_spec=pltpu.PrefetchScalarGridSpec(
            num_scalar_prefetch=1,
            grid=grid,
            in_specs=[
                pl.BlockSpec((ts, B * D), lambda i, seed: (i, 0)),
                pl.BlockSpec((ts, D), lambda i, seed: (i, 0)),
            ],
            out_specs=pl.BlockSpec((ts, B * D), lambda i, seed: (i, 0)),
        ),
        compiler_params=pltpu.CompilerParams(
            dimension_semantics=("parallel",)),
    )(seed_arr, x2, pe)
    return out2.reshape(S, B, D)


if __name__ == "__main__":
    d_model = 64
    pe_table = make_positional_encoding_table(d_model)      # max_len=5000

    # --- small shape, single tile (module-style [seq, batch, d_model]) ---
    seq_len, batch = 8, 2
    x = jax.random.normal(jax.random.PRNGKey(0), (seq_len, batch, d_model),
                          dtype=jnp.float32)
    out = jax.block_until_ready(
        positional_encoding(x, pe_table, p=0.1, training=False))
    ref = x + pe_table[:seq_len][:, None, :]
    assert out.shape == x.shape and out.dtype == x.dtype
    assert jnp.allclose(out, ref, atol=1e-6, rtol=1e-6)

    # --- longer seq, multi-step grid (exercises tiling) ---
    seq_len2 = 64
    x2 = jax.random.normal(jax.random.PRNGKey(1), (seq_len2, batch, d_model),
                           dtype=jnp.float32)
    out2 = jax.block_until_ready(
        positional_encoding(x2, pe_table, p=0.1, training=False, tile_rows=16))
    ref2 = x2 + pe_table[:seq_len2][:, None, :]
    assert jnp.allclose(out2, ref2, atol=1e-6, rtol=1e-6)

    # --- training path: every element is either 0 or (x+pe)/(1-p) ---
    p = 0.1
    out_tr = jax.block_until_ready(
        positional_encoding(x2, pe_table, p=p, training=True, seed=123,
                            tile_rows=16))
    assert out_tr.shape == x2.shape
    scaled = ref2 / (1.0 - p)
    dropped = out_tr == 0.0
    assert jnp.all(dropped | jnp.isclose(out_tr, scaled, atol=1e-5, rtol=1e-5))
    frac = float(jnp.mean(dropped.astype(jnp.float32)))
    assert 0.0 < frac < 0.5, f"unexpected drop fraction {frac}"

    print("KERNEL_OK")
</pallas_src>

<mosaic_0001>
module attributes {stable_mosaic.version = 11 : i64} {
  func.func @_pos_enc_kernel(%arg0: i32, %arg1: memref<1xi32, #tpu.memory_space<smem>>, %arg2: memref<8x128xf32, #tpu.memory_space<vmem>>, %arg3: memref<8x64xf32, #tpu.memory_space<vmem>>, %arg4: memref<8x128xf32, #tpu.memory_space<vmem>>) attributes {dimension_semantics = [#tpu.dimension_semantics<parallel>], iteration_bounds = array<i64: 1>, scalar_prefetch = 1 : i64, scratch_operands = 0 : i64, tpu.core_type = #tpu.core_type<tc>, window_params = [{transform_indices = @transform_0, window_bounds = array<i64: 8, 128>}, {transform_indices = @transform_1, window_bounds = array<i64: 8, 64>}, {transform_indices = @transform_2, window_bounds = array<i64: 8, 128>}]} {
    %c0 = arith.constant 0 : index
    %c0_0 = arith.constant 0 : index
    %0 = vector.load %arg2[%c0, %c0_0] : memref<8x128xf32, #tpu.memory_space<vmem>>, vector<8x128xf32>
    %c0_1 = arith.constant 0 : index
    %c0_2 = arith.constant 0 : index
    %1 = vector.load %arg3[%c0_1, %c0_2] : memref<8x64xf32, #tpu.memory_space<vmem>>, vector<8x64xf32>
    %2 = tpu.concatenate %1, %1 in 1 : vector<8x64xf32>, vector<8x64xf32> -> vector<8x128xf32>
    %3 = arith.addf %0, %2 : vector<8x128xf32>
    %c0_3 = arith.constant 0 : index
    %c0_4 = arith.constant 0 : index
    %4 = vector.load %arg4[%c0_3, %c0_4] : memref<8x128xf32, #tpu.memory_space<vmem>>, vector<8x128xf32>
    tpu.vector_store %arg4[%c0_3, %c0_4], %3 {strides = array<i32>} : memref<8x128xf32, #tpu.memory_space<vmem>>, vector<8x128xf32>,
    return
  }
  func.func @transform_0(%arg0: i32, %arg1: memref<1xi32, #tpu.memory_space<smem>>) -> (i32, i32) {
    %c0_i32 = arith.constant 0 : i32
    %c0_i32_0 = arith.constant 0 : i32
    return %arg0, %c0_i32 : i32, i32
  }
  func.func @transform_1(%arg0: i32, %arg1: memref<1xi32, #tpu.memory_space<smem>>) -> (i32, i32) {
    %c0_i32 = arith.constant 0 : i32
    %c0_i32_0 = arith.constant 0 : i32
    return %arg0, %c0_i32 : i32, i32
  }
  func.func @transform_2(%arg0: i32, %arg1: memref<1xi32, #tpu.memory_space<smem>>) -> (i32, i32) {
    %c0_i32 = arith.constant 0 : i32
    %c0_i32_0 = arith.constant 0 : i32
    return %arg0, %c0_i32 : i32, i32
  }
}

</mosaic_0001>

<llo_original>
// kernel: tpu_custom_call.1
$region0: #{tpu_custom_call.1}
  #allocation0 [shape = 'u32[]', space=smem, size = 0x4, offset = 0x4, fixed_abs, tag = 'smem constant byte address 0x4 - core index']
  #allocation1 [shape = 'u32[72,128]{1,0:T(1,128)}', space=vmem, size = 0x9000, scoped, tag = 'internal scratch']
  #allocation2 [shape = 's32[1]{0}', space=sflag, size = 0x4, scoped, tag = 'scoped memory for tpu_custom_call.1']
  #allocation3 [shape = 's32[1]{0:T(128)S(6)}', space=smem, size = 0x200, scoped, tag = 'prefetched SMEM operand 0']
  %s0 = inlined_call_operand.<no memory space> [shape: s32[1], index: 0, kind: input, shape index: {}]
  %s1 = inlined_call_operand.hbm [shape: f32[8,128], index: 1, kind: input, shape index: {}]
  %s2 = inlined_call_operand.hbm [shape: f32[8,64], index: 2, kind: input, shape index: {}]
  %s3 = inlined_call_operand.hbm [shape: f32[8,128], index: 3, kind: output, shape index: {}]
  %s4 = sld [smem:[#allocation0]]
  $region26: #{tpu_custom_call.1} parent=0
    _
  %s6 = ssub.s32 1, %s4
  %s7 = scalar_select 0, %s6, %s4
  %8 = sst [smem:[#allocation3]] %s0
  $region1: #{tpu_custom_call.1} parent=0
    #allocation4 [shape = 'u8[4096]{0}', space=vmem, size = 0x1000, scoped, tag = 'input window, operand 1, single buffered']
    #allocation5 [shape = 's32[1]{0}', space=sflag, size = 0x4, scoped, tag = 'scoped memory for tpu_custom_call.1']
    #allocation6 [shape = 's32[1]{0}', space=sflag, size = 0x4, scoped, tag = 'scoped memory for tpu_custom_call.1']
    #allocation7 [shape = 'u8[4096]{0}', space=vmem, size = 0x1000, scoped, tag = 'input window, operand 2, single buffered']
    #allocation8 [shape = 's32[1]{0}', space=sflag, size = 0x4, scoped, tag = 'scoped memory for tpu_custom_call.1']
    #allocation9 [shape = 'u8[4096]{0}', space=vmem, size = 0x1000, scoped, tag = 'output window, operand 0, single buffered']
    %9 = vsyncpa [#allocation5], 0
    %10 = vsyncpa [#allocation8], 0
    %11 = vsyncpa [#allocation6], 0
    // Predicated region
    $region2: #{tpu_custom_call.1} parent=1 // pred_check
      _
    $region3: #{tpu_custom_call.1} parent=1 // pred_check_branch
      %13 = sbr.rel (0) target = $region5
    $region4: #{tpu_custom_call.1} parent=1 // pred_region
      %15 = vsyncadd [#allocation5], 0
      %s17 = sshll.u32 %s1, 4
      %s18 = int_to_ptr.hbm [resolvable:$true] %s17
      %s19 = sshll.u32 [#allocation4], 4
      %s20 = int_to_ptr.vmem [resolvable:$true] %s19
      %22 = dma.hbm_to_vmem [thread:$0]  %s18, 128, %s20, [#allocation5]
    $region5: #{tpu_custom_call.1} parent=1 // pred_fallthru
      _
    // Predicated region
    $region6: #{tpu_custom_call.1} parent=1 // pred_check
      _
    $region7: #{tpu_custom_call.1} parent=1 // pred_check_branch
      %24 = sbr.rel (0) target = $region9
    $region8: #{tpu_custom_call.1} parent=1 // pred_region
      %26 = vsyncadd [#allocation8], 0
      %s28 = sshll.u32 %s2, 4
      %s29 = int_to_ptr.hbm [resolvable:$true] %s28
      %s30 = sshll.u32 [#allocation7], 4
      %s31 = int_to_ptr.vmem [resolvable:$true] %s30
      %33 = dma.hbm_to_vmem [thread:$0]  %s29, 128, %s31, [#allocation8]
    $region9: #{tpu_custom_call.1} parent=1 // pred_fallthru
      _
    // Predicated region
    $region10: #{tpu_custom_call.1} parent=1 // pred_check
      _
    $region11: #{tpu_custom_call.1} parent=1 // pred_check_branch
      %35 = sbr.rel (0) target = $region13
    $region12: #{tpu_custom_call.1} parent=1 // pred_region
      %37 = dma.done [#allocation5], 128
    $region13: #{tpu_custom_call.1} parent=1 // pred_fallthru
      _
    // Predicated region
    $region14: #{tpu_custom_call.1} parent=1 // pred_check
      _
    $region15: #{tpu_custom_call.1} parent=1 // pred_check_branch
      %39 = sbr.rel (0) target = $region17
    $region16: #{tpu_custom_call.1} parent=1 // pred_region
      %41 = dma.done [#allocation8], 128
    $region17: #{tpu_custom_call.1} parent=1 // pred_fallthru
      _
    %v42 = vld [vmem:[#allocation4] sm:$0xff]
    %v43 = vld [vmem:[#allocation7] sm:$0xff]
    %45 = vrot.lane.b32.xlu0 %v43, 64
    %v46 = vpop.permute.xlu0 %45
    %vm48 = vcmask 523264
    %v49 = vsel %vm48, %v43, %v46
    %v50 = vadd.f32 %v42, %v49
    %51 = vst [vmem:[#allocation9] sm:$0xff] %v50
    // Predicated region
    $region18: #{tpu_custom_call.1} parent=1 // pred_check
      _
    $region19: #{tpu_custom_call.1} parent=1 // pred_check_branch
      %53 = sbr.rel (0) target = $region21
    $region20: #{tpu_custom_call.1} parent=1 // pred_region
      %55 = vsyncadd [#allocation6], 0
      %s57 = sshll.u32 [#allocation9], 4
      %s58 = int_to_ptr.vmem [resolvable:$true] %s57
      %s59 = sshll.u32 %s3, 4
      %s60 = int_to_ptr.hbm [resolvable:$true] %s59
      %62 = dma.vmem_to_hbm [thread:$0]  %s58, 128, %s60, [#allocation6]
    $region21: #{tpu_custom_call.1} parent=1 // pred_fallthru
      _
    // Predicated region
    $region22: #{tpu_custom_call.1} parent=1 // pred_check
      _
    $region23: #{tpu_custom_call.1} parent=1 // pred_check_branch
      %64 = sbr.rel (0) target = $region25
    $region24: #{tpu_custom_call.1} parent=1 // pred_region
      %66 = dma.done [#allocation6], 128
    $region25: #{tpu_custom_call.1} parent=1 // pred_fallthru
      _
    %67 = vsyncpa [#allocation5], 1
    %68 = vsyncpa [#allocation8], 1
    %69 = vsyncpa [#allocation6], 1

</llo_original>
